<compile_context>
chip_gen: v7x
topology: tpu7x:2x2x1
jax: 0.10.0
libtpu: 0.0.40
codegen_flags: <defaults>
</compile_context>

<pallas_src>
import jax
import jax.numpy as jnp
from jax import lax
from jax.experimental import pallas as pl
from jax.experimental.pallas import tpu as pltpu

LANE = 128
SUBLANE = 8


def _round_up(n, m):
    return ((n + m - 1) // m) * m


def _pad2d(a, rows, cols):
    r, c = a.shape
    return jnp.pad(a, ((0, rows - r), (0, cols - c)))


def _pick_point_tile(n, target=256):
    """Point tile: multiple of 8, capped so TB*TN activations stay VMEM-friendly."""
    return min(_round_up(target, SUBLANE), _round_up(n, SUBLANE))


def _bf16_epilogue_default():
    """bf16 ReLU/pool epilogue only where the VPU has native bf16 (v6e/v7x)."""
    try:
        kind = jax.devices()[0].device_kind.lower()
    except Exception:
        return True
    return not any(t in kind for t in ("v5 lite", "v5e", "v4", "v3", "v2"))


# ----------------------------------------------------------------------------
# Fused kernel body: per-point MLP -> running max over point tiles -> head.
# ----------------------------------------------------------------------------
def _make_fused_kernel(n_pp, n_hidden, has_fc, *, tb, tn, n_valid, mask_needed,
                       bf16_epilogue):
    def kernel(*refs):
        idx = 0
        x_ref = refs[idx]; idx += 1                                   # (TB, TN, C_in) bf16
        pp = [(refs[idx + 2 * i], refs[idx + 2 * i + 1]) for i in range(n_pp)]
        idx += 2 * n_pp
        hidden = [(refs[idx + 2 * i], refs[idx + 2 * i + 1]) for i in range(n_hidden)]
        idx += 2 * n_hidden
        if has_fc:
            fc_w_ref, fc_b_ref = refs[idx], refs[idx + 1]
            idx += 2
        out_ref = refs[idx]; idx += 1                                 # (TB, out_pad) f32
        acc_ref = refs[idx]                                           # (TB, feat_pad) scratch

        n = pl.program_id(1)
        n_last = pl.num_programs(1) - 1

        @pl.when(n == 0)
        def _():
            acc_ref[...] = jnp.full(acc_ref.shape, -jnp.inf, acc_ref.dtype)

        # ---- per-point MLP on the flattened (TB*TN, C) tile ----
        c_in = x_ref.shape[-1]
        h = x_ref[...].reshape(tb * tn, c_in)                         # bf16 MXU operand
        for li, (w_ref, t_ref) in enumerate(pp):
            y = jnp.dot(h, w_ref[...], preferred_element_type=jnp.float32) + t_ref[...]
            if li + 1 < n_pp or bf16_epilogue:
                h = jnp.maximum(y.astype(jnp.bfloat16), 0)            # feeds next matmul / bf16 pool
            else:
                h = jnp.maximum(y, 0.0)                               # f32 epilogue (v5e path)

        h3 = h.reshape(tb, tn, h.shape[-1])                           # (TB, TN, feat_pad)

        # ---- running max over point tiles (padded points masked to -inf) ----
        def pool_update(masked):
            hv = h3
            if masked:
                pt = lax.broadcasted_iota(jnp.int32, h3.shape, 1) + n * tn
                hv = jnp.where(pt < n_valid, h3, jnp.full_like(h3, -jnp.inf))
            tile_max = jnp.max(hv, axis=1)                            # (TB, feat_pad)
            acc_ref[...] = jnp.maximum(acc_ref[...], tile_max.astype(acc_ref.dtype))

        if mask_needed:
            # Only the last point tile can contain padded rows.
            @pl.when(n == n_last)
            def _():
                pool_update(True)

            @pl.when(n != n_last)
            def _():
                pool_update(False)
        else:
            pool_update(False)

        # ---- fused head (hidden MLP + fc) on the final pooled block ----
        @pl.when(n == n_last)
        def _():
            g = acc_ref[...]
            for (w_ref, t_ref) in hidden:
                g = jnp.maximum(
                    jnp.dot(g.astype(jnp.bfloat16), w_ref[...],
                            preferred_element_type=jnp.float32) + t_ref[...], 0.0)
            if has_fc:
                g = jnp.dot(g.astype(jnp.bfloat16), fc_w_ref[...],
                            preferred_element_type=jnp.float32) + fc_b_ref[...]
            out_ref[...] = g.astype(out_ref.dtype)

    return kernel


# ----------------------------------------------------------------------------
# Host-side parameter preparation: fold BN, pad to lane-dense, cast to bf16.
# ----------------------------------------------------------------------------
def prepare_kernel_params(params, input_channel):
    prep = {"pp": [], "hidden": []}
    in_dim, in_pad = input_channel, input_channel        # x channels are NOT padded
    for (w, b, s, t) in params["pp"]:
        out_c = w.shape[1]
        out_pad = _round_up(out_c, LANE)
        prep["pp"].append((
            _pad2d(w * s, in_pad, out_pad).astype(jnp.bfloat16),
            _pad2d(b * s + t, 1, out_pad).astype(jnp.float32)))
        in_dim, in_pad = out_c, out_pad
    prep["feat_dim"], prep["feat_pad"] = in_dim, in_pad
    for (w, b, s, t) in params["hidden"]:
        out_c = w.shape[1]
        out_pad = _round_up(out_c, LANE)
        prep["hidden"].append((
            _pad2d(w * s, in_pad, out_pad).astype(jnp.bfloat16),
            _pad2d(b * s + t, 1, out_pad).astype(jnp.float32)))
        in_dim, in_pad = out_c, out_pad
    prep["has_fc"] = "fc" in params
    if prep["has_fc"]:
        w, b = params["fc"]
        out_c = w.shape[1]
        out_pad = _round_up(out_c, LANE)
        prep["fc"] = (_pad2d(w, in_pad, out_pad).astype(jnp.bfloat16),
                      _pad2d(b, 1, out_pad).astype(jnp.float32))
        in_dim, in_pad = out_c, out_pad
    prep["out_dim"], prep["out_pad"] = in_dim, in_pad
    return prep


# ----------------------------------------------------------------------------
# Forward wrapper
# ----------------------------------------------------------------------------
def mini_pointnet_forward(x_bcn, params, *, point_tile=None, batch_tile=SUBLANE,
                          bf16_epilogue=None):
    """x_bcn: (B, C, N) float32 (PyTorch layout).  Returns (B, output_size)."""
    B, C_in, N = x_bcn.shape
    if bf16_epilogue is None:
        bf16_epilogue = _bf16_epilogue_default()
    prep = prepare_kernel_params(params, C_in)

    # (B, C, N) -> (B, N, C) channels-last; bf16 halves x HBM traffic.
    x = jnp.transpose(x_bcn, (0, 2, 1)).astype(jnp.bfloat16)

    TB = _round_up(max(1, batch_tile), SUBLANE)
    B_pad = _round_up(B, TB)
    TN = point_tile if point_tile is not None else _pick_point_tile(N)
    TN = _round_up(TN, SUBLANE)
    N_pad = _round_up(N, TN)
    if B_pad != B or N_pad != N:
        x = jnp.pad(x, ((0, B_pad - B), (0, N_pad - N), (0, 0)))
    nb, n_tiles = B_pad // TB, N_pad // TN

    feat_pad, out_pad = prep["feat_pad"], prep["out_pad"]
    acc_dtype = jnp.bfloat16 if bf16_epilogue else jnp.float32

    all_wt = prep["pp"] + prep["hidden"] + ([prep["fc"]] if prep["has_fc"] else [])
    args = [x]
    specs = [pl.BlockSpec((TB, TN, C_in), lambda b, n: (b, n, 0))]
    for (w, t) in all_wt:
        args += [w, t]
        specs += [pl.BlockSpec(w.shape, lambda b, n: (0, 0)),
                  pl.BlockSpec(t.shape, lambda b, n: (0, 0))]

    # Cost estimate with UNPADDED channel counts.
    pp_dims = [w.shape for (w, _, _, _) in params["pp"]]
    hd_dims = [w.shape for (w, _, _, _) in params["hidden"]]
    fc_dims = [params["fc"][0].shape] if "fc" in params else []
    flops = (2 * B * N * sum(i * o for (i, o) in pp_dims)
             + 2 * B * sum(i * o for (i, o) in hd_dims + fc_dims))
    bytes_accessed = int(x.size * 2
                         + sum(int(w.size) * 2 + int(t.size) * 4 for (w, t) in all_wt)
                         + B_pad * out_pad * 4)

    # Rough per-step VMEM footprint -> scoped limit (capped for v7x's 64 MiB).
    widest = max([feat_pad] + [int(w.shape[1]) for (w, _) in prep["pp"]])
    weight_bytes = sum(int(w.size) * 2 + int(t.size) * 4 for (w, t) in all_wt)
    vmem_est = (2 * TB * TN * C_in * 2 + 2 * weight_bytes + 2 * TB * out_pad * 4
                + TB * feat_pad * 4 + TB * TN * widest * 6)
    vmem_limit = int(min(64 * 1024 * 1024, max(32 * 1024 * 1024, 2 * vmem_est)))

    kernel = _make_fused_kernel(
        len(prep["pp"]), len(prep["hidden"]), prep["has_fc"],
        tb=TB, tn=TN, n_valid=N, mask_needed=(N_pad != N),
        bf16_epilogue=bf16_epilogue)

    out = pl.pallas_call(
        kernel,
        out_shape=jax.ShapeDtypeStruct((B_pad, out_pad), jnp.float32),
        grid_spec=pltpu.PrefetchScalarGridSpec(
            num_scalar_prefetch=0,
            grid=(nb, n_tiles),
            in_specs=specs,
            out_specs=pl.BlockSpec((TB, out_pad), lambda b, n: (b, 0)),
            scratch_shapes=[pltpu.VMEM((TB, feat_pad), acc_dtype)],
        ),
        compiler_params=pltpu.CompilerParams(
            dimension_semantics=("parallel", "arbitrary"),
            vmem_limit_bytes=vmem_limit,
        ),
        cost_estimate=pl.CostEstimate(
            flops=int(flops), transcendentals=0, bytes_accessed=bytes_accessed),
    )(*args)

    return out[:B, :prep["out_dim"]]


# ----------------------------------------------------------------------------
# Deterministic parameter construction (shapes follow MiniPointNet.__init__).
# ----------------------------------------------------------------------------
def _folded_bn(key, c, eps=1e-5):
    k1, k2, k3, k4 = jax.random.split(key, 4)
    gamma = jax.random.uniform(k1, (1, c), jnp.float32, 0.5, 1.5)
    beta = 0.1 * jax.random.normal(k2, (1, c), jnp.float32)
    mean = 0.1 * jax.random.normal(k3, (1, c), jnp.float32)
    var = jax.random.uniform(k4, (1, c), jnp.float32, 0.5, 1.5)
    scale = gamma / jnp.sqrt(var + eps)
    shift = beta - mean * scale
    return scale, shift


def make_params(key, input_channel, per_point_mlp, hidden_mlp, output_size):
    params = {"pp": [], "hidden": []}
    in_c = input_channel
    for out_c in per_point_mlp:
        key, kw, kb, kbn = jax.random.split(key, 4)
        w = 0.2 * jax.random.normal(kw, (in_c, out_c), jnp.float32)
        b = 0.1 * jax.random.normal(kb, (1, out_c), jnp.float32)
        scale, shift = _folded_bn(kbn, out_c)
        params["pp"].append((w, b, scale, shift))
        in_c = out_c
    for out_c in hidden_mlp:
        key, kw, kb, kbn = jax.random.split(key, 4)
        w = 0.2 * jax.random.normal(kw, (in_c, out_c), jnp.float32)
        b = 0.1 * jax.random.normal(kb, (1, out_c), jnp.float32)
        scale, shift = _folded_bn(kbn, out_c)
        params["hidden"].append((w, b, scale, shift))
        in_c = out_c
    if output_size > 0:
        key, kw, kb = jax.random.split(key, 3)
        w = 0.2 * jax.random.normal(kw, (in_c, output_size), jnp.float32)
        b = 0.1 * jax.random.normal(kb, (1, output_size), jnp.float32)
        params["fc"] = (w, b)
    return params


def reference_forward(x_bcn, params):
    """Pure-JAX f32 reference matching the PyTorch forward (eval-mode BN)."""
    h = jnp.transpose(x_bcn, (0, 2, 1))                  # (B, N, C)
    for (w, b, s, t) in params["pp"]:
        h = jnp.maximum((h @ w + b) * s + t, 0.0)
    g = jnp.max(h, axis=1)                               # AdaptiveMaxPool1d(1)+Flatten
    for (w, b, s, t) in params["hidden"]:
        g = jnp.maximum((g @ w + b) * s + t, 0.0)
    if "fc" in params:
        w, b = params["fc"]
        g = g @ w + b
    return g


if __name__ == "__main__":
    key = jax.random.PRNGKey(0)
    kx, kp, kx2, kp2 = jax.random.split(key, 4)

    # Test 1: x is (B, C, N).  point_tile=8 forces two point tiles so the
    # running-max accumulator + fused head (hidden+fc) paths are exercised.
    B, C_IN, N = 2, 4, 16
    PER_POINT_MLP = [32, 64]
    HIDDEN_MLP = [32]
    OUTPUT_SIZE = 8
    x = jax.random.normal(kx, (B, C_IN, N), jnp.float32)
    params = make_params(kp, C_IN, PER_POINT_MLP, HIDDEN_MLP, OUTPUT_SIZE)

    out = jax.block_until_ready(mini_pointnet_forward(x, params, point_tile=8))
    ref = reference_forward(x, params)
    assert out.shape == (B, OUTPUT_SIZE), out.shape
    err = jnp.max(jnp.abs(out - ref))
    # bf16 matmul operands (f32 accumulation) -> relaxed tolerance vs f32 ref.
    assert jnp.allclose(out, ref, atol=5e-2, rtol=5e-2), f"max abs err {err}"

    # Test 2: odd N (point padding + -inf masking), B not a multiple of the
    # batch tile, no hidden layers, no final fc (output = pooled feature).
    B2, C2, N2 = 3, 3, 13
    x2 = jax.random.normal(kx2, (B2, C2, N2), jnp.float32)
    params2 = make_params(kp2, C2, [16, 32], [], 0)
    out2 = jax.block_until_ready(mini_pointnet_forward(x2, params2))
    ref2 = reference_forward(x2, params2)
    assert out2.shape == ref2.shape, (out2.shape, ref2.shape)
    err2 = jnp.max(jnp.abs(out2 - ref2))
    assert jnp.allclose(out2, ref2, atol=5e-2, rtol=5e-2), f"max abs err {err2}"

    print("KERNEL_OK")
</pallas_src>

<mosaic_0001>
module attributes {stable_mosaic.version = 11 : i64} {
  func.func @kernel(%arg0: i32, %arg1: i32, %arg2: memref<8x8x4xbf16, #tpu.memory_space<vmem>>, %arg3: memref<4x128xbf16, #tpu.memory_space<vmem>>, %arg4: memref<1x128xf32, #tpu.memory_space<vmem>>, %arg5: memref<128x128xbf16, #tpu.memory_space<vmem>>, %arg6: memref<1x128xf32, #tpu.memory_space<vmem>>, %arg7: memref<128x128xbf16, #tpu.memory_space<vmem>>, %arg8: memref<1x128xf32, #tpu.memory_space<vmem>>, %arg9: memref<128x128xbf16, #tpu.memory_space<vmem>>, %arg10: memref<1x128xf32, #tpu.memory_space<vmem>>, %arg11: memref<8x128xf32, #tpu.memory_space<vmem>>, %arg12: memref<8x128xbf16, #tpu.memory_space<vmem>>) attributes {dimension_semantics = [#tpu.dimension_semantics<parallel>, #tpu.dimension_semantics<arbitrary>], iteration_bounds = array<i64: 1, 2>, scalar_prefetch = 0 : i64, scratch_operands = 1 : i64, tpu.core_type = #tpu.core_type<tc>, window_params = [{transform_indices = @transform_0, window_bounds = array<i64: 8, 8, 4>}, {pipeline_mode = #tpu.pipeline_mode<synchronous>, transform_indices = @transform_1, window_bounds = array<i64: 4, 128>}, {pipeline_mode = #tpu.pipeline_mode<synchronous>, transform_indices = @transform_2, window_bounds = array<i64: 1, 128>}, {pipeline_mode = #tpu.pipeline_mode<synchronous>, transform_indices = @transform_3, window_bounds = array<i64: 128, 128>}, {pipeline_mode = #tpu.pipeline_mode<synchronous>, transform_indices = @transform_4, window_bounds = array<i64: 1, 128>}, {pipeline_mode = #tpu.pipeline_mode<synchronous>, transform_indices = @transform_5, window_bounds = array<i64: 128, 128>}, {pipeline_mode = #tpu.pipeline_mode<synchronous>, transform_indices = @transform_6, window_bounds = array<i64: 1, 128>}, {pipeline_mode = #tpu.pipeline_mode<synchronous>, transform_indices = @transform_7, window_bounds = array<i64: 128, 128>}, {pipeline_mode = #tpu.pipeline_mode<synchronous>, transform_indices = @transform_8, window_bounds = array<i64: 1, 128>}, {transform_indices = @transform_9, window_bounds = array<i64: 8, 128>}]} {
    %c0_i32 = arith.constant 0 : i32
    %0 = arith.cmpi eq, %arg1, %c0_i32 : i32
    %1 = arith.extui %0 : i1 to i32
    %c0_i32_0 = arith.constant 0 : i32
    %2 = arith.cmpi ne, %1, %c0_i32_0 : i32
    scf.if %2 {
      %cst_20 = arith.constant 0xFF80 : bf16
      %29 = vector.broadcast %cst_20 : bf16 to vector<8x128xbf16>
      %c0_21 = arith.constant 0 : index
      %c0_22 = arith.constant 0 : index
      %30 = vector.load %arg12[%c0_21, %c0_22] : memref<8x128xbf16, #tpu.memory_space<vmem>>, vector<8x128xbf16>
      tpu.vector_store %arg12[%c0_21, %c0_22], %29 {strides = array<i32>} : memref<8x128xbf16, #tpu.memory_space<vmem>>, vector<8x128xbf16>,
    } else {
    }
    %c0 = arith.constant 0 : index
    %c0_1 = arith.constant 0 : index
    %c0_2 = arith.constant 0 : index
    %3 = vector.load %arg2[%c0, %c0_1, %c0_2] : memref<8x8x4xbf16, #tpu.memory_space<vmem>>, vector<8x8x4xbf16>
    %4 = vector.shape_cast %3 : vector<8x8x4xbf16> to vector<64x4xbf16>
    %c0_3 = arith.constant 0 : index
    %c0_4 = arith.constant 0 : index
    %5 = vector.load %arg3[%c0_3, %c0_4] : memref<4x128xbf16, #tpu.memory_space<vmem>>, vector<4x128xbf16>
    %cst = arith.constant dense<0.000000e+00> : vector<64x128xf32>
    %6 = tpu.matmul %4, %5, %cst {dimension_numbers = #tpu.dot_dimension_numbers<[1], [0], [0], [1], [0, 0, 1, 1], [], []>} : vector<64x4xbf16>, vector<4x128xbf16>, vector<64x128xf32> -> vector<64x128xf32>
    %c0_5 = arith.constant 0 : index
    %c0_6 = arith.constant 0 : index
    %7 = vector.load %arg4[%c0_5, %c0_6] : memref<1x128xf32, #tpu.memory_space<vmem>>, vector<1x128xf32>
    %8 = vector.broadcast %7 : vector<1x128xf32> to vector<64x128xf32>
    %9 = arith.addf %6, %8 : vector<64x128xf32>
    %10 = arith.truncf %9 : vector<64x128xf32> to vector<64x128xbf16>
    %cst_7 = arith.constant 0.000000e+00 : bf16
    %11 = vector.broadcast %cst_7 : bf16 to vector<64x128xbf16>
    %12 = arith.maximumf %10, %11 : vector<64x128xbf16>
    %c0_8 = arith.constant 0 : index
    %c0_9 = arith.constant 0 : index
    %13 = vector.load %arg5[%c0_8, %c0_9] : memref<128x128xbf16, #tpu.memory_space<vmem>>, vector<128x128xbf16>
    %cst_10 = arith.constant dense<0.000000e+00> : vector<64x128xf32>
    %14 = tpu.matmul %12, %13, %cst_10 {dimension_numbers = #tpu.dot_dimension_numbers<[1], [0], [0], [1], [0, 0, 1, 1], [], []>} : vector<64x128xbf16>, vector<128x128xbf16>, vector<64x128xf32> -> vector<64x128xf32>
    %c0_11 = arith.constant 0 : index
    %c0_12 = arith.constant 0 : index
    %15 = vector.load %arg6[%c0_11, %c0_12] : memref<1x128xf32, #tpu.memory_space<vmem>>, vector<1x128xf32>
    %16 = vector.broadcast %15 : vector<1x128xf32> to vector<64x128xf32>
    %17 = arith.addf %14, %16 : vector<64x128xf32>
    %18 = arith.truncf %17 : vector<64x128xf32> to vector<64x128xbf16>
    %cst_13 = arith.constant 0.000000e+00 : bf16
    %19 = vector.broadcast %cst_13 : bf16 to vector<64x128xbf16>
    %20 = arith.maximumf %18, %19 : vector<64x128xbf16>
    %21 = vector.shape_cast %20 : vector<64x128xbf16> to vector<8x8x128xbf16>
    %cst_14 = arith.constant dense<0xFF80> : vector<8x128xbf16>
    %22 = vector.multi_reduction <maximumf>, %21, %cst_14 [1] : vector<8x8x128xbf16> to vector<8x128xbf16>
    %c0_15 = arith.constant 0 : index
    %c0_16 = arith.constant 0 : index
    %23 = vector.load %arg12[%c0_15, %c0_16] : memref<8x128xbf16, #tpu.memory_space<vmem>>, vector<8x128xbf16>
    %24 = arith.maximumf %23, %22 : vector<8x128xbf16>
    %c0_17 = arith.constant 0 : index
    %c0_18 = arith.constant 0 : index
    %25 = vector.load %arg12[%c0_17, %c0_18] : memref<8x128xbf16, #tpu.memory_space<vmem>>, vector<8x128xbf16>
    tpu.vector_store %arg12[%c0_17, %c0_18], %24 {strides = array<i32>} : memref<8x128xbf16, #tpu.memory_space<vmem>>, vector<8x128xbf16>,
    %c1_i32 = arith.constant 1 : i32
    %26 = arith.cmpi eq, %arg1, %c1_i32 : i32
    %27 = arith.extui %26 : i1 to i32
    %c0_i32_19 = arith.constant 0 : i32
    %28 = arith.cmpi ne, %27, %c0_i32_19 : i32
    scf.if %28 {
      %c0_20 = arith.constant 0 : index
      %c0_21 = arith.constant 0 : index
      %29 = vector.load %arg12[%c0_20, %c0_21] : memref<8x128xbf16, #tpu.memory_space<vmem>>, vector<8x128xbf16>
      %c0_22 = arith.constant 0 : index
      %c0_23 = arith.constant 0 : index
      %30 = vector.load %arg7[%c0_22, %c0_23] : memref<128x128xbf16, #tpu.memory_space<vmem>>, vector<128x128xbf16>
      %cst_24 = arith.constant dense<0.000000e+00> : vector<8x128xf32>
      %31 = tpu.matmul %29, %30, %cst_24 {dimension_numbers = #tpu.dot_dimension_numbers<[1], [0], [0], [1], [0, 0, 1, 1], [], []>} : vector<8x128xbf16>, vector<128x128xbf16>, vector<8x128xf32> -> vector<8x128xf32>
      %c0_25 = arith.constant 0 : index
      %c0_26 = arith.constant 0 : index
      %32 = vector.load %arg8[%c0_25, %c0_26] : memref<1x128xf32, #tpu.memory_space<vmem>>, vector<1x128xf32>
      %33 = vector.broadcast %32 : vector<1x128xf32> to vector<8x128xf32>
      %34 = arith.addf %31, %33 : vector<8x128xf32>
      %cst_27 = arith.constant 0.000000e+00 : f32
      %35 = vector.broadcast %cst_27 : f32 to vector<8x128xf32>
      %36 = arith.maximumf %34, %35 : vector<8x128xf32>
      %37 = arith.truncf %36 : vector<8x128xf32> to vector<8x128xbf16>
      %c0_28 = arith.constant 0 : index
      %c0_29 = arith.constant 0 : index
      %38 = vector.load %arg9[%c0_28, %c0_29] : memref<128x128xbf16, #tpu.memory_space<vmem>>, vector<128x128xbf16>
      %cst_30 = arith.constant dense<0.000000e+00> : vector<8x128xf32>
      %39 = tpu.matmul %37, %38, %cst_30 {dimension_numbers = #tpu.dot_dimension_numbers<[1], [0], [0], [1], [0, 0, 1, 1], [], []>} : vector<8x128xbf16>, vector<128x128xbf16>, vector<8x128xf32> -> vector<8x128xf32>
      %c0_31 = arith.constant 0 : index
      %c0_32 = arith.constant 0 : index
      %40 = vector.load %arg10[%c0_31, %c0_32] : memref<1x128xf32, #tpu.memory_space<vmem>>, vector<1x128xf32>
      %41 = vector.broadcast %40 : vector<1x128xf32> to vector<8x128xf32>
      %42 = arith.addf %39, %41 : vector<8x128xf32>
      %c0_33 = arith.constant 0 : index
      %c0_34 = arith.constant 0 : index
      %43 = vector.load %arg11[%c0_33, %c0_34] : memref<8x128xf32, #tpu.memory_space<vmem>>, vector<8x128xf32>
      tpu.vector_store %arg11[%c0_33, %c0_34], %42 {strides = array<i32>} : memref<8x128xf32, #tpu.memory_space<vmem>>, vector<8x128xf32>,
    } else {
    }
    return
  }
  func.func @transform_0(%arg0: i32, %arg1: i32) -> (i32, i32, i32) {
    %c0_i32 = arith.constant 0 : i32
    %c0_i32_0 = arith.constant 0 : i32
    return %arg0, %arg1, %c0_i32 : i32, i32, i32
  }
  func.func @transform_1(%arg0: i32, %arg1: i32) -> (i32, i32) {
    %c0_i32 = arith.constant 0 : i32
    %c0_i32_0 = arith.constant 0 : i32
    %c0_i32_1 = arith.constant 0 : i32
    return %c0_i32, %c0_i32_0 : i32, i32
  }
  func.func @transform_2(%arg0: i32, %arg1: i32) -> (i32, i32) {
    %c0_i32 = arith.constant 0 : i32
    %c0_i32_0 = arith.constant 0 : i32
    %c0_i32_1 = arith.constant 0 : i32
    return %c0_i32, %c0_i32_0 : i32, i32
  }
  func.func @transform_3(%arg0: i32, %arg1: i32) -> (i32, i32) {
    %c0_i32 = arith.constant 0 : i32
    %c0_i32_0 = arith.constant 0 : i32
    %c0_i32_1 = arith.constant 0 : i32
    return %c0_i32, %c0_i32_0 : i32, i32
  }
  func.func @transform_4(%arg0: i32, %arg1: i32) -> (i32, i32) {
    %c0_i32 = arith.constant 0 : i32
    %c0_i32_0 = arith.constant 0 : i32
    %c0_i32_1 = arith.constant 0 : i32
    return %c0_i32, %c0_i32_0 : i32, i32
  }
  func.func @transform_5(%arg0: i32, %arg1: i32) -> (i32, i32) {
    %c0_i32 = arith.constant 0 : i32
    %c0_i32_0 = arith.constant 0 : i32
    %c0_i32_1 = arith.constant 0 : i32
    return %c0_i32, %c0_i32_0 : i32, i32
  }
  func.func @transform_6(%arg0: i32, %arg1: i32) -> (i32, i32) {
    %c0_i32 = arith.constant 0 : i32
    %c0_i32_0 = arith.constant 0 : i32
    %c0_i32_1 = arith.constant 0 : i32
    return %c0_i32, %c0_i32_0 : i32, i32
  }
  func.func @transform_7(%arg0: i32, %arg1: i32) -> (i32, i32) {
    %c0_i32 = arith.constant 0 : i32
    %c0_i32_0 = arith.constant 0 : i32
    %c0_i32_1 = arith.constant 0 : i32
    return %c0_i32, %c0_i32_0 : i32, i32
  }
  func.func @transform_8(%arg0: i32, %arg1: i32) -> (i32, i32) {
    %c0_i32 = arith.constant 0 : i32
    %c0_i32_0 = arith.constant 0 : i32
    %c0_i32_1 = arith.constant 0 : i32
    return %c0_i32, %c0_i32_0 : i32, i32
  }
  func.func @transform_9(%arg0: i32, %arg1: i32) -> (i32, i32) {
    %c0_i32 = arith.constant 0 : i32
    %c0_i32_0 = arith.constant 0 : i32
    return %arg0, %c0_i32 : i32, i32
  }
}

</mosaic_0001>

<llo_original>
// kernel: tpu_custom_call.1
$region0: #{tpu_custom_call.1}
  #allocation0 [shape = 'u32[]', space=smem, size = 0x4, offset = 0x4, fixed_abs, tag = 'smem constant byte address 0x4 - core index']
  #allocation1 [shape = 'u32[144,128]{1,0:T(1,128)}', space=vmem, size = 0x12000, scoped, tag = 'internal scratch']
  #allocation2 [shape = 'bf16[8,128]{1,0:T(8,128)(2,1)}', space=vmem, size = 0x800, scoped, tag = 'scratch operand']
  %s0 = inlined_call_operand.vmem [shape: bf16[8,16,4], index: 0, kind: input, shape index: {}]
  %s1 = inlined_call_operand.vmem [shape: bf16[4,128], index: 1, kind: input, shape index: {}]
  %s2 = inlined_call_operand.vmem [shape: f32[1,128], index: 2, kind: input, shape index: {}]
  %s3 = inlined_call_operand.vmem [shape: bf16[128,128], index: 3, kind: input, shape index: {}]
  %s4 = inlined_call_operand.vmem [shape: f32[1,128], index: 4, kind: input, shape index: {}]
  %s5 = inlined_call_operand.hbm [shape: bf16[128,128], index: 5, kind: input, shape index: {}]
  %s6 = inlined_call_operand.vmem [shape: f32[1,128], index: 6, kind: input, shape index: {}]
  %s7 = inlined_call_operand.hbm [shape: bf16[128,128], index: 7, kind: input, shape index: {}]
  %s8 = inlined_call_operand.vmem [shape: f32[1,128], index: 8, kind: input, shape index: {}]
  %s9 = inlined_call_operand.hbm [shape: f32[8,128], index: 9, kind: output, shape index: {}]
  %s10 = sld [smem:[#allocation0]]
  $region126: #{tpu_custom_call.1} parent=0
    _
  %s12 = ssub.s32 1, %s10
  %s13 = scalar_select 0, %s12, %s10
  $region1: #{tpu_custom_call.1} parent=0
    #allocation3 [shape = 'u8[32768]{0}', space=vmem, size = 0x8000, scoped, tag = 'input window, operand 0']
    #allocation4 [shape = 'u8[32768]{0}', space=vmem, size = 0x8000, scoped, tag = 'input window, operand 5, single buffered']
    #allocation5 [shape = 's32[2]{0}', space=sflag, size = 0x8, scoped, tag = 'scoped memory for tpu_custom_call.1']
    #allocation6 [shape = 's32[2]{0}', space=sflag, size = 0x8, scoped, tag = 'scoped memory for tpu_custom_call.1']
    #allocation7 [shape = 'u8[32768]{0}', space=vmem, size = 0x8000, scoped, tag = 'input window, operand 7, single buffered']
    #allocation8 [shape = 's32[1]{0}', space=sflag, size = 0x4, scoped, tag = 'scoped memory for tpu_custom_call.1']
    #allocation9 [shape = 'u8[4096]{0}', space=vmem, size = 0x1000, scoped, tag = 'output window, operand 0, single buffered']
    %14 = vsyncpa [#allocation5], 0
    %15 = vsyncpa [#allocation8], 0
    %16 = vsyncpa [#allocation6], 0
    loop: start=0, step=1, limit=4
    $region2: #{tpu_custom_call.1} parent=1 // loop_pre_header
      _
    $region3: #{tpu_custom_call.1} parent=1 // loop_header
      %s18 = sphi 0, %s22
      %p19 = scmp.ge.s32.totalorder %s18, 4
      %s25 = sphi 0, %s37
      %s26 = sphi 0, %s33
      %s27 = sphi 0, %s25
      %s28 = sphi 0, %s26
      %s29 = sphi 0, %s27
      %s30 = sphi 0, %s28
      %s42 = sphi 0, %s44
      %s45 = sphi 0, %s42
      %s46 = sphi 0, %s45
      %s62 = sphi 0, %s46
      %s66 = sphi 0, %s66
      %s68 = sphi 0, %s66
      %s69 = sphi 0, %s68
      %s83 = sphi 0, %s69
      %s87 = sphi 0, %s87
      %s89 = sphi 0, %s87
      %s90 = sphi 0, %s89
      %s104 = sphi 0, %s90
      %s108 = sphi 0, %s108
      %s110 = sphi 0, %s108
      %s111 = sphi 0, %s110
      %s125 = sphi 0, %s111
      %s129 = sphi 0, %s129
      %s131 = sphi 0, %s129
      %s132 = sphi 0, %s131
      %s146 = sphi 0, %s132
      %s150 = sphi 0, %s150
      %s152 = sphi 0, %s150
      %s153 = sphi 0, %s152
      %s167 = sphi 0, %s153
      %s171 = sphi 0, %s171
      %s173 = sphi 0, %s171
      %s174 = sphi 0, %s173
      %s188 = sphi 0, %s174
      %s192 = sphi 0, %s192
      %s194 = sphi 0, %s192
      %s195 = sphi 0, %s194
      %s209 = sphi 0, %s195
      %s213 = sphi 0, %s213
      %s215 = sphi 0, %s213
      %s216 = sphi 0, %s215
      %s230 = sphi 0, %s216
      %s236 = sphi 0, %s238
      %s239 = sphi 0, %s236
      %s240 = sphi 0, %s239
      %s256 = sphi 0, %s240
    $region4: #{tpu_custom_call.1} parent=1 // loop_header_branch
      %21 = sbr.rel (%p19) target = $region8
    $region5: #{tpu_custom_call.1} parent=1 // loop_body
      %s23 = ssub.s32 %s18, 1
      %s24 = ssub.s32 %s18, 2
      %s31 = sadd.s32 1, %s26
      %p32 = scmp.ge.s32.totalorder %s31, 2
      %s33 = scalar_select %p32, 0, %s31
      %s34 = sadd.s32 1, %s25
      %s35 = scalar_select %p32, %s34, %s25
      %p36 = scmp.ge.s32.totalorder %s35, 1
      %s37 = scalar_select %p36, 0, %s35
      %s38 = ssub.s32 %s25, %s37
      %s39 = ssub.s32 %s26, %s33
      %s40 = sor.u32 %s38, %s39
      %p41 = scmp.eq.s32.totalorder %s40, 0
      %s43 = sadd.s32 %s42, 1
      %s44 = scalar_select %p41, %s42, %s43
      %p47 = pneg %p41
      %p48 = scmp.eq.s32.totalorder %s18, 1
      %p49 = por %p47, %p48
      %p50 = scmp.ne.s32.totalorder %s42, %s45
      %p51 = scmp.eq.s32.totalorder %s18, 0
      %p52 = por %p50, %p51
      %p53 = scmp.ne.s32.totalorder %s42, %s45
      %p54 = scmp.eq.s32.totalorder %s23, 1
      %p55 = por %p53, %p54
      %p56 = scmp.ne.s32.totalorder %s45, %s46
      %p57 = scmp.eq.s32.totalorder %s23, 0
      %p58 = por %p56, %p57
      %p59 = scmp.ne.s32.totalorder %s45, %s46
      %p60 = scmp.eq.s32.totalorder %s24, 1
      %p61 = por %p59, %p60
      %p63 = scmp.ne.s32.totalorder %s46, %s62
      %p64 = scmp.eq.s32.totalorder %s24, 0
      %p65 = por %p63, %p64
      %s67 = sadd.s32 %s66, 1
      %p70 = scmp.eq.s32.totalorder %s18, 1
      %p71 = scmp.ne.s32.totalorder %s66, %s68
      %p72 = scmp.eq.s32.totalorder %s18, 0
      %p73 = por %p71, %p72
      %p74 = scmp.ne.s32.totalorder %s66, %s68
      %p75 = scmp.eq.s32.totalorder %s23, 1
      %p76 = por %p74, %p75
      %p77 = scmp.ne.s32.totalorder %s68, %s69
      %p78 = scmp.eq.s32.totalorder %s23, 0
      %p79 = por %p77, %p78
      %p80 = scmp.ne.s32.totalorder %s68, %s69
      %p81 = scmp.eq.s32.totalorder %s24, 1
      %p82 = por %p80, %p81
      %p84 = scmp.ne.s32.totalorder %s69, %s83
      %p85 = scmp.eq.s32.totalorder %s24, 0
      %p86 = por %p84, %p85
      %s88 = sadd.s32 %s87, 1
      %p91 = scmp.eq.s32.totalorder %s18, 1
      %p92 = scmp.ne.s32.totalorder %s87, %s89
      %p93 = scmp.eq.s32.totalorder %s18, 0
      %p94 = por %p92, %p93
      %p95 = scmp.ne.s32.totalorder %s87, %s89
      %p96 = scmp.eq.s32.totalorder %s23, 1
      %p97 = por %p95, %p96
      %p98 = scmp.ne.s32.totalorder %s89, %s90
      %p99 = scmp.eq.s32.totalorder %s23, 0
      %p100 = por %p98, %p99
      %p101 = scmp.ne.s32.totalorder %s89, %s90
      %p102 = scmp.eq.s32.totalorder %s24, 1
      %p103 = por %p101, %p102
      %p105 = scmp.ne.s32.totalorder %s90, %s104
      %p106 = scmp.eq.s32.totalorder %s24, 0
      %p107 = por %p105, %p106
      %s109 = sadd.s32 %s108, 1
      %p112 = scmp.eq.s32.totalorder %s18, 1
      %p113 = scmp.ne.s32.totalorder %s108, %s110
      %p114 = scmp.eq.s32.totalorder %s18, 0
      %p115 = por %p113, %p114
      %p116 = scmp.ne.s32.totalorder %s108, %s110
      %p117 = scmp.eq.s32.totalorder %s23, 1
      %p118 = por %p116, %p117
      %p119 = scmp.ne.s32.totalorder %s110, %s111
      %p120 = scmp.eq.s32.totalorder %s23, 0
      %p121 = por %p119, %p120
      %p122 = scmp.ne.s32.totalorder %s110, %s111
      %p123 = scmp.eq.s32.totalorder %s24, 1
      %p124 = por %p122, %p123
      %p126 = scmp.ne.s32.totalorder %s111, %s125
      %p127 = scmp.eq.s32.totalorder %s24, 0
      %p128 = por %p126, %p127
      %s130 = sadd.s32 %s129, 1
      %p133 = scmp.eq.s32.totalorder %s18, 1
      %p134 = scmp.ne.s32.totalorder %s129, %s131
      %p135 = scmp.eq.s32.totalorder %s18, 0
      %p136 = por %p134, %p135
      %p137 = scmp.ne.s32.totalorder %s129, %s131
      %p138 = scmp.eq.s32.totalorder %s23, 1
      %p139 = por %p137, %p138
      %p140 = scmp.ne.s32.totalorder %s131, %s132
      %p141 = scmp.eq.s32.totalorder %s23, 0
      %p142 = por %p140, %p141
      %p143 = scmp.ne.s32.totalorder %s131, %s132
      %p144 = scmp.eq.s32.totalorder %s24, 1
      %p145 = por %p143, %p144
      %p147 = scmp.ne.s32.totalorder %s132, %s146
      %p148 = scmp.eq.s32.totalorder %s24, 0
      %p149 = por %p147, %p148
      %s151 = sadd.s32 %s150, 1
      %p154 = scmp.eq.s32.totalorder %s18, 1
      %p155 = scmp.ne.s32.totalorder %s150, %s152
      %p156 = scmp.eq.s32.totalorder %s18, 0
      %p157 = por %p155, %p156
      %p158 = scmp.ne.s32.totalorder %s150, %s152
      %p159 = scmp.eq.s32.totalorder %s23, 1
      %p160 = por %p158, %p159
      %p161 = scmp.ne.s32.totalorder %s152, %s153
      %p162 = scmp.eq.s32.totalorder %s23, 0
      %p163 = por %p161, %p162
      %p164 = scmp.ne.s32.totalorder %s152, %s153
      %p165 = scmp.eq.s32.totalorder %s24, 1
      %p166 = por %p164, %p165
      %p168 = scmp.ne.s32.totalorder %s153, %s167
      %p169 = scmp.eq.s32.totalorder %s24, 0
      %p170 = por %p168, %p169
      %s172 = sadd.s32 %s171, 1
      %p175 = scmp.eq.s32.totalorder %s18, 1
      %p176 = scmp.ne.s32.totalorder %s171, %s173
      %p177 = scmp.eq.s32.totalorder %s18, 0
      %p178 = por %p176, %p177
      %p179 = scmp.ne.s32.totalorder %s171, %s173
      %p180 = scmp.eq.s32.totalorder %s23, 1
      %p181 = por %p179, %p180
      %p182 = scmp.ne.s32.totalorder %s173, %s174
      %p183 = scmp.eq.s32.totalorder %s23, 0
      %p184 = por %p182, %p183
      %p185 = scmp.ne.s32.totalorder %s173, %s174
      %p186 = scmp.eq.s32.totalorder %s24, 1
      %p187 = por %p185, %p186
      %p189 = scmp.ne.s32.totalorder %s174, %s188
      %p190 = scmp.eq.s32.totalorder %s24, 0
      %p191 = por %p189, %p190
      %s193 = sadd.s32 %s192, 1
      %p196 = scmp.eq.s32.totalorder %s18, 1
      %p197 = scmp.ne.s32.totalorder %s192, %s194
      %p198 = scmp.eq.s32.totalorder %s18, 0
      %p199 = por %p197, %p198
      %p200 = scmp.ne.s32.totalorder %s192, %s194
      %p201 = scmp.eq.s32.totalorder %s23, 1
      %p202 = por %p200, %p201
      %p203 = scmp.ne.s32.totalorder %s194, %s195
      %p204 = scmp.eq.s32.totalorder %s23, 0
      %p205 = por %p203, %p204
      %p206 = scmp.ne.s32.totalorder %s194, %s195
      %p207 = scmp.eq.s32.totalorder %s24, 1
      %p208 = por %p206, %p207
      %p210 = scmp.ne.s32.totalorder %s195, %s209
      %p211 = scmp.eq.s32.totalorder %s24, 0
      %p212 = por %p210, %p211
      %s214 = sadd.s32 %s213, 1
      %p217 = scmp.eq.s32.totalorder %s18, 1
      %p218 = scmp.ne.s32.totalorder %s213, %s215
      %p219 = scmp.eq.s32.totalorder %s18, 0
      %p220 = por %p218, %p219
      %p221 = scmp.ne.s32.totalorder %s213, %s215
      %p222 = scmp.eq.s32.totalorder %s23, 1
      %p223 = por %p221, %p222
      %p224 = scmp.ne.s32.totalorder %s215, %s216
      %p225 = scmp.eq.s32.totalorder %s23, 0
      %p226 = por %p224, %p225
      %p227 = scmp.ne.s32.totalorder %s215, %s216
      %p228 = scmp.eq.s32.totalorder %s24, 1
      %p229 = por %p227, %p228
      %p231 = scmp.ne.s32.totalorder %s216, %s230
      %p232 = scmp.eq.s32.totalorder %s24, 0
      %p233 = por %p231, %p232
      %s234 = ssub.s32 %s25, %s37
      %p235 = scmp.eq.s32.totalorder %s234, 0
      %s237 = sadd.s32 %s236, 1
      %s238 = scalar_select %p235, %s236, %s237
      %p241 = pneg %p235
      %p242 = scmp.eq.s32.totalorder %s18, 1
      %p243 = por %p241, %p242
      %p244 = scmp.ne.s32.totalorder %s236, %s239
      %p245 = scmp.eq.s32.totalorder %s18, 0
      %p246 = por %p244, %p245
      %p247 = scmp.ne.s32.totalorder %s236, %s239
      %p248 = scmp.eq.s32.totalorder %s23, 1
      %p249 = por %p247, %p248
      %p250 = scmp.ne.s32.totalorder %s239, %s240
      %p251 = scmp.eq.s32.totalorder %s23, 0
      %p252 = por %p250, %p251
      %p253 = scmp.ne.s32.totalorder %s239, %s240
      %p254 = scmp.eq.s32.totalorder %s24, 1
      %p255 = por %p253, %p254
      %p257 = scmp.ne.s32.totalorder %s240, %s256
      %p258 = scmp.eq.s32.totalorder %s24, 0
      %p259 = por %p257, %p258
      %p260 = scmp.le.s32.totalorder 1, %s18
      %p261 = scmp.lt.s32.totalorder %s18, 3
      %p262 = pnand %p260, %p261
      %p263 = pneg %p262
      // Predicated region
      $region9: #{tpu_custom_call.1} parent=5 // pred_check
        _
      $region10: #{tpu_custom_call.1} parent=5 // pred_check_branch
        %265 = sbr.rel (%p262) target = $region12
      $region11: #{tpu_custom_call.1} parent=5 // pred_region
        %s266 = ssub.s32 %s18, 1
        // Predicated region
        $region13: #{tpu_custom_call.1} parent=11 // pred_check
          %p267 = pneg %p79
        $region14: #{tpu_custom_call.1} parent=11 // pred_check_branch
          %269 = sbr.rel (%p267) target = $region16
        $region15: #{tpu_custom_call.1} parent=11 // pred_region
          _
        $region16: #{tpu_custom_call.1} parent=11 // pred_fallthru
          _
        // Predicated region
        $region17: #{tpu_custom_call.1} parent=11 // pred_check
          %p270 = pneg %p100
        $region18: #{tpu_custom_call.1} parent=11 // pred_check_branch
          %272 = sbr.rel (%p270) target = $region20
        $region19: #{tpu_custom_call.1} parent=11 // pred_region
          _
        $region20: #{tpu_custom_call.1} parent=11 // pred_fallthru
          _
        // Predicated region
        $region21: #{tpu_custom_call.1} parent=11 // pred_check
          %p273 = pneg %p121
        $region22: #{tpu_custom_call.1} parent=11 // pred_check_branch
          %275 = sbr.rel (%p273) target = $region24
        $region23: #{tpu_custom_call.1} parent=11 // pred_region
          _
        $region24: #{tpu_custom_call.1} parent=11 // pred_fallthru
          _
        // Predicated region
        $region25: #{tpu_custom_call.1} parent=11 // pred_check
          %p276 = pneg %p142
        $region26: #{tpu_custom_call.1} parent=11 // pred_check_branch
          %278 = sbr.rel (%p276) target = $region28
        $region27: #{tpu_custom_call.1} parent=11 // pred_region
          _
        $region28: #{tpu_custom_call.1} parent=11 // pred_fallthru
          _
        // Predicated region
        $region29: #{tpu_custom_call.1} parent=11 // pred_check
          %p279 = pneg %p163
        $region30: #{tpu_custom_call.1} parent=11 // pred_check_branch
          %281 = sbr.rel (%p279) target = $region32
        $region31: #{tpu_custom_call.1} parent=11 // pred_region
          %s283 = ssub.s32 1024, 1024
          %284 = vsyncadd [#allocation5], %s283
          %s285 = sshll.u32 [#allocation4], 4
          %s286 = int_to_ptr.vmem [resolvable:$true] %s285
          %291 = dma.hbm_to_vmem [thread:$0]  %s5, 1024, %s286, [#allocation5], 64, 64, 4
        $region32: #{tpu_custom_call.1} parent=11 // pred_fallthru
          _
        // Predicated region
        $region33: #{tpu_custom_call.1} parent=11 // pred_check
          %p292 = pneg %p184
        $region34: #{tpu_custom_call.1} parent=11 // pred_check_branch
          %294 = sbr.rel (%p292) target = $region36
        $region35: #{tpu_custom_call.1} parent=11 // pred_region
          _
        $region36: #{tpu_custom_call.1} parent=11 // pred_fallthru
          _
        // Predicated region
        $region37: #{tpu_custom_call.1} parent=11 // pred_check
          %p295 = pneg %p205
        $region38: #{tpu_custom_call.1} parent=11 // pred_check_branch
          %297 = sbr.rel (%p295) target = $region40
        $region39: #{tpu_custom_call.1} parent=11 // pred_region
          %s299 = ssub.s32 1024, 1024
          %300 = vsyncadd [#allocation8], %s299
          %s301 = sshll.u32 [#allocation7], 4
          %s302 = int_to_ptr.vmem [resolvable:$true] %s301
          %307 = dma.hbm_to_vmem [thread:$0]  %s7, 1024, %s302, [#allocation8], 64, 64, 4
        $region40: #{tpu_custom_call.1} parent=11 // pred_fallthru
          _
        // Predicated region
        $region41: #{tpu_custom_call.1} parent=11 // pred_check
          %p308 = pneg %p226
        $region42: #{tpu_custom_call.1} parent=11 // pred_check_branch
          %310 = sbr.rel (%p308) target = $region44
        $region43: #{tpu_custom_call.1} parent=11 // pred_region
          _
        $region44: #{tpu_custom_call.1} parent=11 // pred_fallthru
          _
      $region12: #{tpu_custom_call.1} parent=5 // pred_fallthru
        _
      %p311 = scmp.lt.s32.totalorder %s18, 2
      // Predicated region
      $region45: #{tpu_custom_call.1} parent=5 // pred_check
        %p312 = pneg %p311
      $region46: #{tpu_custom_call.1} parent=5 // pred_check_branch
        %314 = sbr.rel (%p312) target = $region48
      $region47: #{tpu_custom_call.1} parent=5 // pred_region
        // Predicated region
        $region49: #{tpu_custom_call.1} parent=47 // pred_check
          %p315 = pneg %p52
        $region50: #{tpu_custom_call.1} parent=47 // pred_check_branch
          %317 = sbr.rel (%p315) target = $region52
        $region51: #{tpu_custom_call.1} parent=47 // pred_region
          %s318 = sand.u32 %s42, 1
          %s319 = sand.u32 %s42, 1
          %s320 = smul.addr %s319, 32
          %s321 = scalar_lea.vmem [#allocation3], %s320
          %s322 = smul.u32 8, %s25
          %s323 = smul.addr %s322, 2
          %s324 = sadd.s32 %s26, %s323
          %s325 = smul.addr %s324, 4
          %s326 = scalar_lea.vmem %s0, %s325
          // Predicated region
          $region53: #{tpu_custom_call.1} parent=51 // pred_check
            _
          $region54: #{tpu_custom_call.1} parent=51 // pred_check_branch
            %328 = sbr.rel (0) target = $region56
          $region55: #{tpu_custom_call.1} parent=51 // pred_region
            // Predicated region
            $region57: #{tpu_custom_call.1} parent=55 // pred_check
              _
            $region58: #{tpu_custom_call.1} parent=55 // pred_check_branch
              %330 = sbr.rel target = $region60
            $region59: #{tpu_custom_call.1} parent=55 // pred_region
              // Predicated region
              $region72: #{tpu_custom_call.1} parent=59 // pred_check
                _
              $region73: #{tpu_custom_call.1} parent=59 // pred_check_branch
                %359 = sbr.rel (0) target = $region75
              $region74: #{tpu_custom_call.1} parent=59 // pred_region
                loop: start=0, step=1, limit=1
                $region76: #{tpu_custom_call.1} parent=74 // loop_pre_header
                  _
                $region77: #{tpu_custom_call.1} parent=74 // loop_header
                  %s361 = sphi 0, %s365
                  %p362 = scmp.ge.s32.totalorder %s361, 1
                  %s366 = sphi %s326, %s326
                  %s367 = sphi %s321, %s321
                $region78: #{tpu_custom_call.1} parent=74 // loop_header_branch
                  %364 = sbr.rel (%p362) target = $region82
                $region79: #{tpu_custom_call.1} parent=74 // loop_body
                  _
                $region80: #{tpu_custom_call.1} parent=74 // loop_footer
                  %s365 = sadd.s32 1, %s361
                $region81: #{tpu_custom_call.1} parent=74 // loop_footer_branch
                  %360 = sbr.rel target = $region77
                $region82: #{tpu_custom_call.1} parent=74 // loop_exit
                  _
                loop: start=0, step=1, limit=1
                $region83: #{tpu_custom_call.1} parent=74 // loop_pre_header
                  _
                $region84: #{tpu_custom_call.1} parent=74 // loop_header
                  %s370 = sphi 0, %s374
                  %p371 = scmp.ge.s32.totalorder %s370, 1
                  %s375 = sphi %s326, %s326
                  %s376 = sphi %s321, %s321
                $region85: #{tpu_custom_call.1} parent=74 // loop_header_branch
                  %373 = sbr.rel (%p371) target = $region89
                $region86: #{tpu_custom_call.1} parent=74 // loop_body
                  %v377 = vld [vmem:[%s375] sm:$0xf]
                  %378 = vst [vmem:[%s376] sm:$0xf] %v377
                  %v379 = vld [vmem:[%s375 + $0x8] sm:$0xf]
                  %380 = vst [vmem:[%s376 + $0x4] sm:$0xf] %v379
                  %v381 = vld [vmem:[%s375 + $0x10] sm:$0xf]
                  %382 = vst [vmem:[%s376 + $0x8] sm:$0xf] %v381
                  %v383 = vld [vmem:[%s375 + $0x18] sm:$0xf]
                  %384 = vst [vmem:[%s376 + $0xc] sm:$0xf] %v383
                  %v385 = vld [vmem:[%s375 + $0x20] sm:$0xf]
                  %386 = vst [vmem:[%s376 + $0x10] sm:$0xf] %v385
                  %v387 = vld [vmem:[%s375 + $0x28] sm:$0xf]
                  %388 = vst [vmem:[%s376 + $0x14] sm:$0xf] %v387
                  %v389 = vld [vmem:[%s375 + $0x30] sm:$0xf]
                  %390 = vst [vmem:[%s376 + $0x18] sm:$0xf] %v389
                  %v391 = vld [vmem:[%s375 + $0x38] sm:$0xf]
                  %392 = vst [vmem:[%s376 + $0x1c] sm:$0xf] %v391
                $region87: #{tpu_custom_call.1} parent=74 // loop_footer
                  %s374 = sadd.s32 1, %s370
                $region88: #{tpu_custom_call.1} parent=74 // loop_footer_branch
                  %369 = sbr.rel target = $region84
                $region89: #{tpu_custom_call.1} parent=74 // loop_exit
                  _
              $region75: #{tpu_custom_call.1} parent=59 // pred_fallthru
                _
            $region60: #{tpu_custom_call.1} parent=55 // pred_fallthru
              _
            // Predicated region
            $region61: #{tpu_custom_call.1} parent=55 // pred_check
              _
            $region62: #{tpu_custom_call.1} parent=55 // pred_check_branch
              %332 = sbr.rel (0) target = $region64
            $region63: #{tpu_custom_call.1} parent=55 // pred_region
              loop: start=0, step=1, limit=1
              $region65: #{tpu_custom_call.1} parent=63 // loop_pre_header
                _
              $region66: #{tpu_custom_call.1} parent=63 // loop_header
                %s335 = sphi 0, %s339
                %p336 = scmp.ge.s32.totalorder %s335, 1
                %s340 = sphi %s326, %s326
                %s341 = sphi %s321, %s321
              $region67: #{tpu_custom_call.1} parent=63 // loop_header_branch
                %338 = sbr.rel (%p336) target = $region71
              $region68: #{tpu_custom_call.1} parent=63 // loop_body
                %v342 = vld [vmem:[%s340] sm:$0xf]
                %343 = vst [vmem:[%s341] sm:$0xf] %v342
                %v344 = vld [vmem:[%s340 + $0x8] sm:$0xf]
                %345 = vst [vmem:[%s341 + $0x4] sm:$0xf] %v344
                %v346 = vld [vmem:[%s340 + $0x10] sm:$0xf]
                %347 = vst [vmem:[%s341 + $0x8] sm:$0xf] %v346
                %v348 = vld [vmem:[%s340 + $0x18] sm:$0xf]
                %349 = vst [vmem:[%s341 + $0xc] sm:$0xf] %v348
                %v350 = vld [vmem:[%s340 + $0x20] sm:$0xf]
                %351 = vst [vmem:[%s341 + $0x10] sm:$0xf] %v350
                %v352 = vld [vmem:[%s340 + $0x28] sm:$0xf]
                %353 = vst [vmem:[%s341 + $0x14] sm:$0xf] %v352
                %v354 = vld [vmem:[%s340 + $0x30] sm:$0xf]
                %355 = vst [vmem:[%s341 + $0x18] sm:$0xf] %v354
                %v356 = vld [vmem:[%s340 + $0x38] sm:$0xf]
                %357 = vst [vmem:[%s341 + $0x1c] sm:$0xf] %v356
              $region69: #{tpu_custom_call.1} parent=63 // loop_footer
                %s339 = sadd.s32 1, %s335
              $region70: #{tpu_custom_call.1} parent=63 // loop_footer_branch
                %334 = sbr.rel target = $region66
              $region71: #{tpu_custom_call.1} parent=63 // loop_exit
                _
            $region64: #{tpu_custom_call.1} parent=55 // pred_fallthru
              _
          $region56: #{tpu_custom_call.1} parent=51 // pred_fallthru
            _
          %393 = vnop
        $region52: #{tpu_custom_call.1} parent=47 // pred_fallthru
          _
      $region48: #{tpu_custom_call.1} parent=5 // pred_fallthru
        _
      %p394 = scmp.le.s32.totalorder 1, %s18
      %p395 = scmp.lt.s32.totalorder %s18, 3
      %p396 = pnand %p394, %p395
      %p397 = pneg %p396
      // Predicated region
      $region90: #{tpu_custom_call.1} parent=5 // pred_check
        _
      $region91: #{tpu_custom_call.1} parent=5 // pred_check_branch
        %399 = sbr.rel (%p396) target = $region93
      $region92: #{tpu_custom_call.1} parent=5 // pred_region
        %s400 = ssub.s32 %s18, 1
        %s401 = sand.u32 %s45, 1
        %s402 = sand.u32 %s45, 1
        %s403 = smul.addr %s402, 32
        %s404 = scalar_lea.vmem [#allocation3], %s403
        // Predicated region
        $region94: #{tpu_custom_call.1} parent=92 // pred_check
          %p405 = pneg %p58
        $region95: #{tpu_custom_call.1} parent=92 // pred_check_branch
          %407 = sbr.rel (%p405) target = $region97
        $region96: #{tpu_custom_call.1} parent=92 // pred_region
          _
        $region97: #{tpu_custom_call.1} parent=92 // pred_fallthru
          _
        // Predicated region
        $region98: #{tpu_custom_call.1} parent=92 // pred_check
          %p408 = pneg %p163
        $region99: #{tpu_custom_call.1} parent=92 // pred_check_branch
          %410 = sbr.rel (%p408) target = $region101
        $region100: #{tpu_custom_call.1} parent=92 // pred_region
          %411 = dma.done [#allocation5], 1024
        $region101: #{tpu_custom_call.1} parent=92 // pred_fallthru
          _
        // Predicated region
        $region102: #{tpu_custom_call.1} parent=92 // pred_check
          %p412 = pneg %p205
        $region103: #{tpu_custom_call.1} parent=92 // pred_check_branch
          %414 = sbr.rel (%p412) target = $region105
        $region104: #{tpu_custom_call.1} parent=92 // pred_region
          %415 = dma.done [#allocation8], 1024
        $region105: #{tpu_custom_call.1} parent=92 // pred_fallthru
          _
        %s416 = sand.u32 %s45, 1
        %s417 = sand.u32 %s45, 1
        %s418 = smul.addr %s417, 32
        %s419 = scalar_lea.vmem [#allocation3], %s418
        %p420 = pneg %p58
        %p421 = pneg %p55
        %p422 = pneg %p79
        %p423 = pneg %p76
        %p424 = pneg %p100
        %p425 = pneg %p97
        %p426 = pneg %p121
        %p427 = pneg %p118
        %p428 = pneg %p142
        %p429 = pneg %p139
        %p430 = pneg %p163
        %p431 = pneg %p160
        %p432 = pneg %p184
        %p433 = pneg %p181
        %p434 = pneg %p205
        %p435 = pneg %p202
        %p436 = pneg %p226
        %p437 = pneg %p223
        %p438 = pneg %p252
        %p439 = pneg %p249
        %s440 = smul.u32 8, %s27
        %p443 = scmp.eq.s32.totalorder %s28, 0
        // Predicated region
        $region106: #{tpu_custom_call.1} parent=92 // pred_check
          %p444 = pneg %p443
        $region107: #{tpu_custom_call.1} parent=92 // pred_check_branch
          %446 = sbr.rel (%p444) target = $region109
        $region108: #{tpu_custom_call.1} parent=92 // pred_region
          %447 = vst [vmem:[#allocation2] sm:$0xf] 4286644096
        $region109: #{tpu_custom_call.1} parent=92 // pred_fallthru
          _
        %v448 = vld [vmem:[%s404] sm:$0xf]
        %v449 = vld [vmem:[%s404 + $0x4] sm:$0xf]
        %v450 = vld [vmem:[%s404 + $0x8] sm:$0xf]
        %v451 = vld [vmem:[%s404 + $0xc] sm:$0xf]
        %v452 = vld [vmem:[%s404 + $0x10] sm:$0xf]
        %v453 = vld [vmem:[%s404 + $0x14] sm:$0xf]
        %v454 = vld [vmem:[%s404 + $0x18] sm:$0xf]
        %v455 = vld [vmem:[%s404 + $0x1c] sm:$0xf]
        %v456 = vld [vmem:[%s1] sm:$0x3]
        %v457 = vld [vmem:[%s2] sm:$0x1]
        %v459 = vlaneseq
        %v460 = vshrl.u32 %v459, 7
        %v461 = vsub.s32 0, %v460
        %v462 = vrot.slane %v457, %v461
        %v472 = vunpack.c.l.b16 %v448
        %v473 = vunpack.c.l.b16 %v449
        %v474 = vunpack.c.l.b16 %v450
        %v475 = vunpack.c.l.b16 %v451
        %v476 = vunpack.c.l.b16 %v452
        %v477 = vunpack.c.l.b16 %v453
        %v478 = vunpack.c.l.b16 %v454
        %v479 = vunpack.c.l.b16 %v455
        %v480 = vpack.c.b16 %v473, %v472
        %v481 = vpack.c.b16 %v475, %v474
        %v482 = vpack.c.b16 %v477, %v476
        %v483 = vpack.c.b16 %v479, %v478
        %vm484 = vcmask 31744
        %v486 = vsel %vm484, %v480, 0
        %v489 = vsel %vm484, %v481, 0
        %v492 = vsel %vm484, %v482, 0
        %v495 = vsel %vm484, %v483, 0
        %vm497 = vcmask 1041408
        %v499 = vsel %vm497, %v456, 0
        %501 = vmatprep.subr.bf16.mxu0 0
        %502 = vmatpush1.bf16.msra.mxu0 %v499
        %503 = vmatprep.subr.bf16.mxu0 0
        %504 = vmatpush1.bf16.msra.mxu0 0
        %505 = vmatprep.subr.bf16.mxu0 0
        %506 = vmatpush1.bf16.msra.mxu0 0
        %507 = vmatprep.subr.bf16.mxu0 0
        %508 = vmatpush1.bf16.msra.mxu0 0
        %509 = vmatprep.subr.bf16.mxu0 0
        %510 = vmatpush1.bf16.msra.mxu0 0
        %511 = vmatprep.subr.bf16.mxu0 0
        %512 = vmatpush1.bf16.msra.mxu0 0
        %513 = vmatprep.subr.bf16.mxu0 0
        %514 = vmatpush1.bf16.msra.mxu0 0
        %515 = vmatprep.subr.bf16.mxu0 0
        %516 = vmatpush1.bf16.msra.mxu0 0
        %517 = vmatprep.subr.bf16.mxu0 0
        %518 = vmatpush1.bf16.msra.mxu0 0
        %519 = vmatprep.subr.bf16.mxu0 0
        %520 = vmatpush1.bf16.msra.mxu0 0
        %521 = vmatprep.subr.bf16.mxu0 0
        %522 = vmatpush1.bf16.msra.mxu0 0
        %523 = vmatprep.subr.bf16.mxu0 0
        %524 = vmatpush1.bf16.msra.mxu0 0
        %525 = vmatprep.subr.bf16.mxu0 0
        %526 = vmatpush1.bf16.msra.mxu0 0
        %527 = vmatprep.subr.bf16.mxu0 0
        %528 = vmatpush1.bf16.msra.mxu0 0
        %529 = vmatprep.subr.bf16.mxu0 0
        %530 = vmatpush1.bf16.msra.mxu0 0
        %531 = vmatprep.subr.bf16.mxu0 0
        %532 = vmatpush1.bf16.msra.mxu0 0
        %533 = vmatprep.mubr.bf16.mxu0 0
        %534 = vmatmul.mubr.bf16.gmra.mrb[0].mxu0 %v486
        %v535 = vpop.f32.mrb[0].mxu0
        %v536 = vadd.f32 %v462, %v535
        %v537 = vpop.f32.mrb[0].mxu0
        %v538 = vpop.f32.mrb[0].mxu0
        %v539 = vadd.f32 %v462, %v538
        %v540 = vpop.f32.mrb[0].mxu0
        %541 = vmatprep.mubr.bf16.mxu0 0
        %542 = vmatmul.mubr.bf16.gmra.mrb[0].mxu0 %v489
        %v543 = vpop.f32.mrb[0].mxu0
        %v544 = vadd.f32 %v462, %v543
        %v545 = vpop.f32.mrb[0].mxu0
        %v546 = vpop.f32.mrb[0].mxu0
        %v547 = vadd.f32 %v462, %v546
        %v548 = vpop.f32.mrb[0].mxu0
        %549 = vmatprep.mubr.bf16.mxu0 0
        %550 = vmatmul.mubr.bf16.gmra.mrb[0].mxu0 %v492
        %v551 = vpop.f32.mrb[0].mxu0
        %v552 = vadd.f32 %v462, %v551
        %v553 = vpop.f32.mrb[0].mxu0
        %v554 = vpop.f32.mrb[0].mxu0
        %v555 = vadd.f32 %v462, %v554
        %v556 = vpop.f32.mrb[0].mxu0
        %557 = vmatprep.mubr.bf16.mxu0 0
        %558 = vmatmul.mubr.bf16.gmra.mrb[0].mxu0 %v495
        %v559 = vpop.f32.mrb[0].mxu0
        %v560 = vadd.f32 %v462, %v559
        %v561 = vpop.f32.mrb[0].mxu0
        %v562 = vpop.f32.mrb[0].mxu0
        %v563 = vadd.f32 %v462, %v562
        %v564 = vpop.f32.mrb[0].mxu0
        %565 = vdwg.mxu0
        %v566 = vpack.c.bf16 %v539, %v536
        %v567 = vpack.c.bf16 %v547, %v544
        %v568 = vpack.c.bf16 %v555, %v552
        %v569 = vpack.c.bf16 %v563, %v560
        %v570 = vmax.bf16 %v566, 0
        %v571 = vmax.bf16 %v567, 0
        %v572 = vmax.bf16 %v568, 0
        %v573 = vmax.bf16 %v569, 0
        %v574 = vld [vmem:[%s3] sm:$0xf]
        %v575 = vld [vmem:[%s3 + $0x4] sm:$0xf]
        %v576 = vld [vmem:[%s3 + $0x8] sm:$0xf]
        %v577 = vld [vmem:[%s3 + $0xc] sm:$0xf]
        %v578 = vld [vmem:[%s3 + $0x10] sm:$0xf]
        %v579 = vld [vmem:[%s3 + $0x14] sm:$0xf]
        %v580 = vld [vmem:[%s3 + $0x18] sm:$0xf]
        %v581 = vld [vmem:[%s3 + $0x1c] sm:$0xf]
        %v582 = vld [vmem:[%s3 + $0x20] sm:$0xf]
        %v583 = vld [vmem:[%s3 + $0x24] sm:$0xf]
        %v584 = vld [vmem:[%s3 + $0x28] sm:$0xf]
        %v585 = vld [vmem:[%s3 + $0x2c] sm:$0xf]
        %v586 = vld [vmem:[%s3 + $0x30] sm:$0xf]
        %v587 = vld [vmem:[%s3 + $0x34] sm:$0xf]
        %v588 = vld [vmem:[%s3 + $0x38] sm:$0xf]
        %v589 = vld [vmem:[%s3 + $0x3c] sm:$0xf]
        %v590 = vld [vmem:[%s4] sm:$0x1]
        %v592 = vlaneseq
        %v593 = vshrl.u32 %v592, 7
        %v594 = vsub.s32 0, %v593
        %v595 = vrot.slane %v590, %v594
        %v613 = vunpack.c.l.b16 %v574
        %v614 = vunpack.c.l.b16 %v575
        %v615 = vunpack.c.l.b16 %v576
        %v616 = vunpack.c.l.b16 %v577
        %v617 = vunpack.c.l.b16 %v578
        %v618 = vunpack.c.l.b16 %v579
        %v619 = vunpack.c.l.b16 %v580
        %v620 = vunpack.c.l.b16 %v581
        %v621 = vunpack.c.l.b16 %v582
        %v622 = vunpack.c.l.b16 %v583
        %v623 = vunpack.c.l.b16 %v584
        %v624 = vunpack.c.l.b16 %v585
        %v625 = vunpack.c.l.b16 %v586
        %v626 = vunpack.c.l.b16 %v587
        %v627 = vunpack.c.l.b16 %v588
        %v628 = vunpack.c.l.b16 %v589
        %v629 = vpack.c.b16 %v614, %v613
        %v630 = vpack.c.b16 %v616, %v615
        %v631 = vpack.c.b16 %v618, %v617
        %v632 = vpack.c.b16 %v620, %v619
        %v633 = vpack.c.b16 %v622, %v621
        %v634 = vpack.c.b16 %v624, %v623
        %v635 = vpack.c.b16 %v626, %v625
        %v636 = vpack.c.b16 %v628, %v627
        %645 = vmatprep.subr.bf16.mxu0 0
        %646 = vmatpush1.bf16.msra.mxu0 %v629
        %647 = vmatprep.subr.bf16.mxu0 0
        %648 = vmatpush1.bf16.msra.mxu0 %v630
        %649 = vmatprep.subr.bf16.mxu0 0
        %650 = vmatpush1.bf16.msra.mxu0 %v631
        %651 = vmatprep.subr.bf16.mxu0 0
        %652 = vmatpush1.bf16.msra.mxu0 %v632
        %653 = vmatprep.subr.bf16.mxu0 0
        %654 = vmatpush1.bf16.msra.mxu0 %v633
        %655 = vmatprep.subr.bf16.mxu0 0
        %656 = vmatpush1.bf16.msra.mxu0 %v634
        %657 = vmatprep.subr.bf16.mxu0 0
        %658 = vmatpush1.bf16.msra.mxu0 %v635
        %659 = vmatprep.subr.bf16.mxu0 0
        %660 = vmatpush1.bf16.msra.mxu0 %v636
        %661 = vmatprep.subr.bf16.mxu0 0
        %662 = vmatpush1.bf16.msra.mxu0 0
        %663 = vmatprep.subr.bf16.mxu0 0
        %664 = vmatpush1.bf16.msra.mxu0 0
        %665 = vmatprep.subr.bf16.mxu0 0
        %666 = vmatpush1.bf16.msra.mxu0 0
        %667 = vmatprep.subr.bf16.mxu0 0
        %668 = vmatpush1.bf16.msra.mxu0 0
        %669 = vmatprep.subr.bf16.mxu0 0
        %670 = vmatpush1.bf16.msra.mxu0 0
        %671 = vmatprep.subr.bf16.mxu0 0
        %672 = vmatpush1.bf16.msra.mxu0 0
        %673 = vmatprep.subr.bf16.mxu0 0
        %674 = vmatpush1.bf16.msra.mxu0 0
        %675 = vmatprep.subr.bf16.mxu0 0
        %676 = vmatpush1.bf16.msra.mxu0 0
        %677 = vmatprep.mubr.bf16.mxu0 0
        %678 = vmatmul.mubr.bf16.gmra.mrb[0].mxu0 %v570
        %v679 = vpop.f32.mrb[0].mxu0
        %v680 = vadd.f32 %v595, %v679
        %v681 = vpop.f32.mrb[0].mxu0
        %v682 = vpop.f32.mrb[0].mxu0
        %v683 = vadd.f32 %v595, %v682
        %v684 = vpop.f32.mrb[0].mxu0
        %685 = vmatprep.mubr.bf16.mxu0 0
        %686 = vmatmul.mubr.bf16.gmra.mrb[0].mxu0 %v571
        %v687 = vpop.f32.mrb[0].mxu0
        %v688 = vadd.f32 %v595, %v687
        %v689 = vpop.f32.mrb[0].mxu0
        %v690 = vpop.f32.mrb[0].mxu0
        %v691 = vadd.f32 %v595, %v690
        %v692 = vpop.f32.mrb[0].mxu0
        %693 = vmatprep.mubr.bf16.mxu0 0
        %694 = vmatmul.mubr.bf16.gmra.mrb[0].mxu0 %v572
        %v695 = vpop.f32.mrb[0].mxu0
        %v696 = vadd.f32 %v595, %v695
        %v697 = vpop.f32.mrb[0].mxu0
        %v698 = vpop.f32.mrb[0].mxu0
        %v699 = vadd.f32 %v595, %v698
        %v700 = vpop.f32.mrb[0].mxu0
        %701 = vmatprep.mubr.bf16.mxu0 0
        %702 = vmatmul.mubr.bf16.gmra.mrb[0].mxu0 %v573
        %v703 = vpop.f32.mrb[0].mxu0
        %v704 = vadd.f32 %v595, %v703
        %v705 = vpop.f32.mrb[0].mxu0
        %v706 = vpop.f32.mrb[0].mxu0
        %v707 = vadd.f32 %v595, %v706
        %v708 = vpop.f32.mrb[0].mxu0
        %709 = vdwg.mxu0
        %v710 = vpack.c.bf16 %v683, %v680
        %v711 = vpack.c.bf16 %v691, %v688
        %v712 = vpack.c.bf16 %v699, %v696
        %v713 = vpack.c.bf16 %v707, %v704
        %v714 = vmax.bf16 %v710, 0
        %v715 = vmax.bf16 %v711, 0
        %v716 = vmax.bf16 %v712, 0
        %v717 = vmax.bf16 %v713, 0
        %v722 = vunpack.c.l.b16 %v714
        %v723 = vunpack.c.h.b16 %v714
        %v724 = vunpack.c.l.b16 %v715
        %v725 = vunpack.c.h.b16 %v715
        %v726 = vunpack.c.l.b16 %v716
        %v727 = vunpack.c.h.b16 %v716
        %v728 = vunpack.c.l.b16 %v717
        %v729 = vunpack.c.h.b16 %v717
        %v730 = vpack.c.b16 %v722, %v722
        %v731 = vpack.c.b16 %v723, %v723
        %v732 = vpack.c.b16 %v724, %v724
        %v733 = vpack.c.b16 %v725, %v725
        %v734 = vpack.c.b16 %v726, %v726
        %v735 = vpack.c.b16 %v727, %v727
        %v736 = vpack.c.b16 %v728, %v728
        %v737 = vpack.c.b16 %v729, %v729
        %vm738 = vcmask 1043456
        %v741 = vsel %vm738, %v730, 4286644096
        %v743 = vunpack.i.l.bf16 %v741
        %v744 = vunpack.i.h.bf16 %v741
        %v745 = vmax.f32 %v743, %v744
        %v746 = vrot.slane %v745, 4
        %v747 = vmax.f32 %v745, %v746
        %v748 = vrot.slane %v747, 2
        %v749 = vmax.f32 %v747, %v748
        %v750 = vrot.slane %v749, 1
        %v751 = vmax.f32 %v749, %v750
        %v752 = vpack.i.bf16 %v751, %v751
        %v754 = vsel %vm738, %v731, 4286644096
        %v756 = vunpack.i.l.bf16 %v754
        %v757 = vunpack.i.h.bf16 %v754
        %v758 = vmax.f32 %v756, %v757
        %v759 = vrot.slane %v758, 4
        %v760 = vmax.f32 %v758, %v759
        %v761 = vrot.slane %v760, 2
        %v762 = vmax.f32 %v760, %v761
        %v763 = vrot.slane %v762, 1
        %v764 = vmax.f32 %v762, %v763
        %v765 = vpack.i.bf16 %v764, %v764
        %v767 = vsel %vm738, %v732, 4286644096
        %v769 = vunpack.i.l.bf16 %v767
        %v770 = vunpack.i.h.bf16 %v767
        %v771 = vmax.f32 %v769, %v770
        %v772 = vrot.slane %v771, 4
        %v773 = vmax.f32 %v771, %v772
        %v774 = vrot.slane %v773, 2
        %v775 = vmax.f32 %v773, %v774
        %v776 = vrot.slane %v775, 1
        %v777 = vmax.f32 %v775, %v776
        %v778 = vpack.i.bf16 %v777, %v777
        %v780 = vsel %vm738, %v733, 4286644096
        %v782 = vunpack.i.l.bf16 %v780
        %v783 = vunpack.i.h.bf16 %v780
        %v784 = vmax.f32 %v782, %v783
        %v785 = vrot.slane %v784, 4
        %v786 = vmax.f32 %v784, %v785
        %v787 = vrot.slane %v786, 2
        %v788 = vmax.f32 %v786, %v787
        %v789 = vrot.slane %v788, 1
        %v790 = vmax.f32 %v788, %v789
        %v791 = vpack.i.bf16 %v790, %v790
        %v793 = vsel %vm738, %v734, 4286644096
        %v795 = vunpack.i.l.bf16 %v793
        %v796 = vunpack.i.h.bf16 %v793
        %v797 = vmax.f32 %v795, %v796
        %v798 = vrot.slane %v797, 4
        %v799 = vmax.f32 %v797, %v798
        %v800 = vrot.slane %v799, 2
        %v801 = vmax.f32 %v799, %v800
        %v802 = vrot.slane %v801, 1
        %v803 = vmax.f32 %v801, %v802
        %v804 = vpack.i.bf16 %v803, %v803
        %v806 = vsel %vm738, %v735, 4286644096
        %v808 = vunpack.i.l.bf16 %v806
        %v809 = vunpack.i.h.bf16 %v806
        %v810 = vmax.f32 %v808, %v809
        %v811 = vrot.slane %v810, 4
        %v812 = vmax.f32 %v810, %v811
        %v813 = vrot.slane %v812, 2
        %v814 = vmax.f32 %v812, %v813
        %v815 = vrot.slane %v814, 1
        %v816 = vmax.f32 %v814, %v815
        %v817 = vpack.i.bf16 %v816, %v816
        %v819 = vsel %vm738, %v736, 4286644096
        %v821 = vunpack.i.l.bf16 %v819
        %v822 = vunpack.i.h.bf16 %v819
        %v823 = vmax.f32 %v821, %v822
        %v824 = vrot.slane %v823, 4
        %v825 = vmax.f32 %v823, %v824
        %v826 = vrot.slane %v825, 2
        %v827 = vmax.f32 %v825, %v826
        %v828 = vrot.slane %v827, 1
        %v829 = vmax.f32 %v827, %v828
        %v830 = vpack.i.bf16 %v829, %v829
        %v832 = vsel %vm738, %v737, 4286644096
        %v834 = vunpack.i.l.bf16 %v832
        %v835 = vunpack.i.h.bf16 %v832
        %v836 = vmax.f32 %v834, %v835
        %v837 = vrot.slane %v836, 4
        %v838 = vmax.f32 %v836, %v837
        %v839 = vrot.slane %v838, 2
        %v840 = vmax.f32 %v838, %v839
        %v841 = vrot.slane %v840, 1
        %v842 = vmax.f32 %v840, %v841
        %v843 = vpack.i.bf16 %v842, %v842
        %v844 = vld [vmem:[#allocation2] sm:$0xf]
        %v853 = vunpack.c.l.b16 %v752
        %v854 = vunpack.c.l.b16 %v765
        %v855 = vunpack.c.l.b16 %v778
        %v856 = vunpack.c.l.b16 %v791
        %v857 = vunpack.c.l.b16 %v804
        %v858 = vunpack.c.l.b16 %v817
        %v859 = vunpack.c.l.b16 %v830
        %v860 = vunpack.c.l.b16 %v843
        %v861 = vpack.c.b16 %v853, %v853
        %v862 = vpack.c.b16 %v854, %v854
        %v863 = vpack.c.b16 %v855, %v855
        %v864 = vpack.c.b16 %v856, %v856
        %v865 = vpack.c.b16 %v857, %v857
        %v866 = vpack.c.b16 %v858, %v858
        %v867 = vpack.c.b16 %v859, %v859
        %v868 = vpack.c.b16 %v860, %v860
        %v869 = vunpack.c.l.b16 %v861
        %v870 = vunpack.c.l.b16 %v862
        %v871 = vunpack.c.l.b16 %v863
        %v872 = vunpack.c.l.b16 %v864
        %v873 = vunpack.c.l.b16 %v865
        %v874 = vunpack.c.l.b16 %v866
        %v875 = vunpack.c.l.b16 %v867
        %v876 = vunpack.c.l.b16 %v868
        %vm877 = vcmask 1041409
        %v878 = vsel %vm877, %v870, %v869
        %vm879 = vcmask 1042434
        %v880 = vsel %vm879, %v871, %v878
        %vm881 = vcmask 1043459
        %v882 = vsel %vm881, %v872, %v880
        %vm883 = vcmask 1044484
        %v884 = vsel %vm883, %v873, %v882
        %vm885 = vcmask 1045509
        %v886 = vsel %vm885, %v874, %v884
        %vm887 = vcmask 1046534
        %v888 = vsel %vm887, %v875, %v886
        %vm889 = vcmask 1047559
        %v890 = vsel %vm889, %v876, %v888
        %v891 = vpack.c.b16 %v890, %v890
        %v893 = vmax.bf16 %v844, %v891
        %894 = vst [vmem:[#allocation2] sm:$0xf] %v893
        %p895 = scmp.eq.s32.totalorder %s28, 1
        // Predicated region
        $region110: #{tpu_custom_call.1} parent=92 // pred_check
          %p896 = pneg %p895
        $region111: #{tpu_custom_call.1} parent=92 // pred_check_branch
          %898 = sbr.rel (%p896) target = $region113
        $region112: #{tpu_custom_call.1} parent=92 // pred_region
          %v899 = vld [vmem:[#allocation2] sm:$0xf]
          %v900 = vld [vmem:[#allocation4] sm:$0xf]
          %v901 = vld [vmem:[#allocation4 + $0x4] sm:$0xf]
          %v902 = vld [vmem:[#allocation4 + $0x8] sm:$0xf]
          %v903 = vld [vmem:[#allocation4 + $0xc] sm:$0xf]
          %v904 = vld [vmem:[#allocation4 + $0x10] sm:$0xf]
          %v905 = vld [vmem:[#allocation4 + $0x14] sm:$0xf]
          %v906 = vld [vmem:[#allocation4 + $0x18] sm:$0xf]
          %v907 = vld [vmem:[#allocation4 + $0x1c] sm:$0xf]
          %v908 = vld [vmem:[#allocation4 + $0x20] sm:$0xf]
          %v909 = vld [vmem:[#allocation4 + $0x24] sm:$0xf]
          %v910 = vld [vmem:[#allocation4 + $0x28] sm:$0xf]
          %v911 = vld [vmem:[#allocation4 + $0x2c] sm:$0xf]
          %v912 = vld [vmem:[#allocation4 + $0x30] sm:$0xf]
          %v913 = vld [vmem:[#allocation4 + $0x34] sm:$0xf]
          %v914 = vld [vmem:[#allocation4 + $0x38] sm:$0xf]
          %v915 = vld [vmem:[#allocation4 + $0x3c] sm:$0xf]
          %v916 = vld [vmem:[%s6] sm:$0x1]
          %v918 = vlaneseq
          %v919 = vshrl.u32 %v918, 7
          %v920 = vsub.s32 0, %v919
          %v921 = vrot.slane %v916, %v920
          %v939 = vunpack.c.l.b16 %v900
          %v940 = vunpack.c.l.b16 %v901
          %v941 = vunpack.c.l.b16 %v902
          %v942 = vunpack.c.l.b16 %v903
          %v943 = vunpack.c.l.b16 %v904
          %v944 = vunpack.c.l.b16 %v905
          %v945 = vunpack.c.l.b16 %v906
          %v946 = vunpack.c.l.b16 %v907
          %v947 = vunpack.c.l.b16 %v908
          %v948 = vunpack.c.l.b16 %v909
          %v949 = vunpack.c.l.b16 %v910
          %v950 = vunpack.c.l.b16 %v911
          %v951 = vunpack.c.l.b16 %v912
          %v952 = vunpack.c.l.b16 %v913
          %v953 = vunpack.c.l.b16 %v914
          %v954 = vunpack.c.l.b16 %v915
          %v955 = vpack.c.b16 %v940, %v939
          %v956 = vpack.c.b16 %v942, %v941
          %v957 = vpack.c.b16 %v944, %v943
          %v958 = vpack.c.b16 %v946, %v945
          %v959 = vpack.c.b16 %v948, %v947
          %v960 = vpack.c.b16 %v950, %v949
          %v961 = vpack.c.b16 %v952, %v951
          %v962 = vpack.c.b16 %v954, %v953
          %971 = vmatprep.subr.bf16.mxu0 0
          %972 = vmatpush1.bf16.msra.mxu0 %v955
          %973 = vmatprep.subr.bf16.mxu0 0
          %974 = vmatpush1.bf16.msra.mxu0 %v956
          %975 = vmatprep.subr.bf16.mxu0 0
          %976 = vmatpush1.bf16.msra.mxu0 %v957
          %977 = vmatprep.subr.bf16.mxu0 0
          %978 = vmatpush1.bf16.msra.mxu0 %v958
          %979 = vmatprep.subr.bf16.mxu0 0
          %980 = vmatpush1.bf16.msra.mxu0 %v959
          %981 = vmatprep.subr.bf16.mxu0 0
          %982 = vmatpush1.bf16.msra.mxu0 %v960
          %983 = vmatprep.subr.bf16.mxu0 0
          %984 = vmatpush1.bf16.msra.mxu0 %v961
          %985 = vmatprep.subr.bf16.mxu0 0
          %986 = vmatpush1.bf16.msra.mxu0 %v962
          %987 = vmatprep.subr.bf16.mxu0 0
          %988 = vmatpush1.bf16.msra.mxu0 0
          %989 = vmatprep.subr.bf16.mxu0 0
          %990 = vmatpush1.bf16.msra.mxu0 0
          %991 = vmatprep.subr.bf16.mxu0 0
          %992 = vmatpush1.bf16.msra.mxu0 0
          %993 = vmatprep.subr.bf16.mxu0 0
          %994 = vmatpush1.bf16.msra.mxu0 0
          %995 = vmatprep.subr.bf16.mxu0 0
          %996 = vmatpush1.bf16.msra.mxu0 0
          %997 = vmatprep.subr.bf16.mxu0 0
          %998 = vmatpush1.bf16.msra.mxu0 0
          %999 = vmatprep.subr.bf16.mxu0 0
          %1000 = vmatpush1.bf16.msra.mxu0 0
          %1001 = vmatprep.subr.bf16.mxu0 0
          %1002 = vmatpush1.bf16.msra.mxu0 0
          %1003 = vmatprep.mubr.bf16.mxu0 0
          %1004 = vmatmul.mubr.bf16.gmra.mrb[0].mxu0 %v899
          %v1005 = vpop.f32.mrb[0].mxu0
          %v1006 = vadd.f32 %v921, %v1005
          %v1007 = vpop.f32.mrb[0].mxu0
          %v1008 = vpop.f32.mrb[0].mxu0
          %v1009 = vpop.f32.mrb[0].mxu0
          %1010 = vdwg.mxu0
          %v1011 = vmax.f32 %v1006, 0.0
          %v1012 = vpack.c.bf16 %v1011, %v1011
          %v1013 = vld [vmem:[#allocation7] sm:$0xf]
          %v1014 = vld [vmem:[#allocation7 + $0x4] sm:$0xf]
          %v1015 = vld [vmem:[#allocation7 + $0x8] sm:$0xf]
          %v1016 = vld [vmem:[#allocation7 + $0xc] sm:$0xf]
          %v1017 = vld [vmem:[#allocation7 + $0x10] sm:$0xf]
          %v1018 = vld [vmem:[#allocation7 + $0x14] sm:$0xf]
          %v1019 = vld [vmem:[#allocation7 + $0x18] sm:$0xf]
          %v1020 = vld [vmem:[#allocation7 + $0x1c] sm:$0xf]
          %v1021 = vld [vmem:[#allocation7 + $0x20] sm:$0xf]
          %v1022 = vld [vmem:[#allocation7 + $0x24] sm:$0xf]
          %v1023 = vld [vmem:[#allocation7 + $0x28] sm:$0xf]
          %v1024 = vld [vmem:[#allocation7 + $0x2c] sm:$0xf]
          %v1025 = vld [vmem:[#allocation7 + $0x30] sm:$0xf]
          %v1026 = vld [vmem:[#allocation7 + $0x34] sm:$0xf]
          %v1027 = vld [vmem:[#allocation7 + $0x38] sm:$0xf]
          %v1028 = vld [vmem:[#allocation7 + $0x3c] sm:$0xf]
          %v1029 = vld [vmem:[%s8] sm:$0x1]
          %v1031 = vlaneseq
          %v1032 = vshrl.u32 %v1031, 7
          %v1033 = vsub.s32 0, %v1032
          %v1034 = vrot.slane %v1029, %v1033
          %v1052 = vunpack.c.l.b16 %v1013
          %v1053 = vunpack.c.l.b16 %v1014
          %v1054 = vunpack.c.l.b16 %v1015
          %v1055 = vunpack.c.l.b16 %v1016
          %v1056 = vunpack.c.l.b16 %v1017
          %v1057 = vunpack.c.l.b16 %v1018
          %v1058 = vunpack.c.l.b16 %v1019
          %v1059 = vunpack.c.l.b16 %v1020
          %v1060 = vunpack.c.l.b16 %v1021
          %v1061 = vunpack.c.l.b16 %v1022
          %v1062 = vunpack.c.l.b16 %v1023
          %v1063 = vunpack.c.l.b16 %v1024
          %v1064 = vunpack.c.l.b16 %v1025
          %v1065 = vunpack.c.l.b16 %v1026
          %v1066 = vunpack.c.l.b16 %v1027
          %v1067 = vunpack.c.l.b16 %v1028
          %v1068 = vpack.c.b16 %v1053, %v1052
          %v1069 = vpack.c.b16 %v1055, %v1054
          %v1070 = vpack.c.b16 %v1057, %v1056
          %v1071 = vpack.c.b16 %v1059, %v1058
          %v1072 = vpack.c.b16 %v1061, %v1060
          %v1073 = vpack.c.b16 %v1063, %v1062
          %v1074 = vpack.c.b16 %v1065, %v1064
          %v1075 = vpack.c.b16 %v1067, %v1066
          %1084 = vmatprep.subr.bf16.mxu0 0
          %1085 = vmatpush1.bf16.msra.mxu0 %v1068
          %1086 = vmatprep.subr.bf16.mxu0 0
          %1087 = vmatpush1.bf16.msra.mxu0 %v1069
          %1088 = vmatprep.subr.bf16.mxu0 0
          %1089 = vmatpush1.bf16.msra.mxu0 %v1070
          %1090 = vmatprep.subr.bf16.mxu0 0
          %1091 = vmatpush1.bf16.msra.mxu0 %v1071
          %1092 = vmatprep.subr.bf16.mxu0 0
          %1093 = vmatpush1.bf16.msra.mxu0 %v1072
          %1094 = vmatprep.subr.bf16.mxu0 0
          %1095 = vmatpush1.bf16.msra.mxu0 %v1073
          %1096 = vmatprep.subr.bf16.mxu0 0
          %1097 = vmatpush1.bf16.msra.mxu0 %v1074
          %1098 = vmatprep.subr.bf16.mxu0 0
          %1099 = vmatpush1.bf16.msra.mxu0 %v1075
          %1100 = vmatprep.subr.bf16.mxu0 0
          %1101 = vmatpush1.bf16.msra.mxu0 0
          %1102 = vmatprep.subr.bf16.mxu0 0
          %1103 = vmatpush1.bf16.msra.mxu0 0
          %1104 = vmatprep.subr.bf16.mxu0 0
          %1105 = vmatpush1.bf16.msra.mxu0 0
          %1106 = vmatprep.subr.bf16.mxu0 0
          %1107 = vmatpush1.bf16.msra.mxu0 0
          %1108 = vmatprep.subr.bf16.mxu0 0
          %1109 = vmatpush1.bf16.msra.mxu0 0
          %1110 = vmatprep.subr.bf16.mxu0 0
          %1111 = vmatpush1.bf16.msra.mxu0 0
          %1112 = vmatprep.subr.bf16.mxu0 0
          %1113 = vmatpush1.bf16.msra.mxu0 0
          %1114 = vmatprep.subr.bf16.mxu0 0
          %1115 = vmatpush1.bf16.msra.mxu0 0
          %1116 = vmatprep.mubr.bf16.mxu0 0
          %1117 = vmatmul.mubr.bf16.gmra.mrb[0].mxu0 %v1012
          %v1118 = vpop.f32.mrb[0].mxu0
          %v1119 = vadd.f32 %v1034, %v1118
          %v1120 = vpop.f32.mrb[0].mxu0
          %v1121 = vpop.f32.mrb[0].mxu0
          %v1122 = vpop.f32.mrb[0].mxu0
          %1123 = vdwg.mxu0
          %1124 = vst [vmem:[#allocation9] sm:$0xff] %v1119
        $region113: #{tpu_custom_call.1} parent=92 // pred_fallthru
          _
        // Predicated region
        $region114: #{tpu_custom_call.1} parent=92 // pred_check
          %p1125 = pneg %p249
        $region115: #{tpu_custom_call.1} parent=92 // pred_check_branch
          %1127 = sbr.rel (%p1125) target = $region117
        $region116: #{tpu_custom_call.1} parent=92 // pred_region
          %s1129 = ssub.s32 128, 128
          %1130 = vsyncadd [#allocation6], %s1129
          %s1131 = smul.addr %s27, 128
          %s1132 = scalar_lea.hbm %s9, %s1131
          %s1134 = sshll.u32 [#allocation9], 4
          %s1135 = int_to_ptr.vmem [resolvable:$true] %s1134
          %1137 = dma.vmem_to_hbm [thread:$0]  %s1135, 128, %s1132, [#allocation6]
        $region117: #{tpu_custom_call.1} parent=92 // pred_fallthru
          _
        // Predicated region
        $region118: #{tpu_custom_call.1} parent=92 // pred_check
          %p1138 = pneg %p249
        $region119: #{tpu_custom_call.1} parent=92 // pred_check_branch
          %1140 = sbr.rel (%p1138) target = $region121
        $region120: #{tpu_custom_call.1} parent=92 // pred_region
          %1141 = dma.done [#allocation6], 128
        $region121: #{tpu_custom_call.1} parent=92 // pred_fallthru
          _
      $region93: #{tpu_custom_call.1} parent=5 // pred_fallthru
        _
      %p1142 = scmp.le.s32.totalorder 2, %s18
      // Predicated region
      $region122: #{tpu_custom_call.1} parent=5 // pred_check
        %p1143 = pneg %p1142
      $region123: #{tpu_custom_call.1} parent=5 // pred_check_branch
        %1145 = sbr.rel (%p1143) target = $region125
      $region124: #{tpu_custom_call.1} parent=5 // pred_region
        %s1146 = ssub.s32 %s18, 2
      $region125: #{tpu_custom_call.1} parent=5 // pred_fallthru
        _
    $region6: #{tpu_custom_call.1} parent=1 // loop_footer
      %s22 = sadd.s32 1, %s18
    $region7: #{tpu_custom_call.1} parent=1 // loop_footer_branch
      %17 = sbr.rel target = $region3
    $region8: #{tpu_custom_call.1} parent=1 // loop_exit
      _
    %1147 = vsyncpa [#allocation5], 1
    %s1148 = scalar_lea.sflag [#allocation5], 1
    %1149 = vsyncpa %s1148, 1
    %1150 = vsyncpa [#allocation8], 1
    %1151 = vsyncpa [#allocation6], 1
    %s1152 = scalar_lea.sflag [#allocation6], 1
    %1153 = vsyncpa %s1152, 1

</llo_original>
